<compile_context>
chip_gen: v5e
topology: v5e:2x2
jax: 0.10.0
libtpu: 0.0.40
codegen_flags: <defaults>
</compile_context>

<pallas_src>
import functools

import jax
import jax.numpy as jnp
from jax.experimental import pallas as pl
from jax.experimental.pallas import tpu as pltpu

_MIB = 1024 * 1024


def _neg_ce_kernel(logits_ref, targets_ref, out_ref, acc_ref, *,
                   n_total, steps_per_core, inv_n):
    core = pl.program_id(0)          # "parallel" axis (megacore split)
    step = pl.program_id(1)          # "arbitrary" reduction axis over batch tiles

    @pl.when(step == 0)
    def _init():
        acc_ref[...] = jnp.zeros_like(acc_ref)

    x = logits_ref[...]              # (TILE_N, C), native dtype
    tn, c = x.shape
    t = targets_ref[...]             # (TILE_N, 1), int32

    # Numerically stable log-sum-exp, all in f32 (cast before the subtract so
    # bf16 inputs do not lose bits feeding exp).
    xf = x.astype(jnp.float32)
    m = jnp.max(xf, axis=-1, keepdims=True)                       # (TILE_N, 1)
    shifted = xf - m                                              # (TILE_N, C) f32
    sum_exp = jnp.sum(jnp.exp(shifted), axis=-1, keepdims=True)   # (TILE_N, 1)

    # Target-class gather fused into the shifted domain: the row max cancels in
    # (lse - x[target]), so select straight from `shifted`. The (1, C) iota is
    # broadcast against t inside the compare (no (TILE_N, C) int32 temp), and
    # the sum is exact since each row has exactly one non-zero.
    cls_ids = jax.lax.broadcasted_iota(jnp.int32, (1, c), 1)      # (1, C)
    tgt_shifted = jnp.sum(jnp.where(cls_ids == t, shifted, 0.0),
                          axis=-1, keepdims=True)                 # (TILE_N, 1)

    per_sample = jnp.log(sum_exp) - tgt_shifted                   # CE_i, (TILE_N, 1)

    # Mask rows past the true batch (partial / replayed tiles). Uses the
    # *unclamped* tile id so replayed logits tiles contribute exactly zero.
    # jnp.where is a select: NaN/Inf garbage in masked rows does not propagate.
    global_tile = core * steps_per_core + step
    row_ids = global_tile * tn + jax.lax.broadcasted_iota(jnp.int32, (tn, 1), 0)
    acc_ref[...] += jnp.where(row_ids < n_total, per_sample, 0.0)

    @pl.when(step == pl.num_programs(1) - 1)
    def _finalize():
        # Per-core contribution to -mean(CE); wrapper sums over the cores.
        total = jnp.sum(acc_ref[...], axis=0, keepdims=True)      # (1, 1) f32
        out_ref[...] = (-(total * inv_n)).reshape(out_ref.shape)


def _tpu_plan():
    """Per-generation plan: core count, logits-buffer cap, VMEM budget/cap."""
    kind = ""
    try:
        kind = jax.devices()[0].device_kind.lower()
    except Exception:
        pass
    vmem_cap_hw = 0
    try:
        vmem_cap_hw = int(getattr(pltpu.get_tpu_info(), "vmem_capacity_bytes", 0))
    except Exception:
        pass
    big_vmem = vmem_cap_hw >= 100 * _MIB and "v7" not in kind
    if big_vmem:
        # v5e / v6e: one TensorCore, 128 MiB physical VMEM -> big tiles.
        return dict(num_parallel=1, logits_buf_cap=16 * _MIB,
                    working_budget=80 * _MIB, vmem_cap=96 * _MIB)
    # v7x (or unknown -> conservative): 2 TensorCores, 64 MiB VMEM per core.
    return dict(num_parallel=2, logits_buf_cap=4 * _MIB,
                working_budget=36 * _MIB, vmem_cap=44 * _MIB)


def neg_grad_loss(logits, targets):
    """logits: (N, C) float; targets: (N,) int class indices. Returns scalar f32."""
    n, c = logits.shape
    itemsize = jnp.dtype(logits.dtype).itemsize
    plan = _tpu_plan()
    num_parallel = plan["num_parallel"]

    # ---- tile-size selection: biggest row-tile whose full working set
    # (double-buffered logits + f32 temporaries + targets + accumulator) fits
    # the per-generation VMEM budget; also cap the single logits buffer. -------
    align = 16 if itemsize < 4 else 8
    per_row_bytes = (2 * c * itemsize      # double-buffered logits tile
                     + 4 * c * 4           # f32 temps (xf / shifted / exp / select)
                     + 2 * 128 * 4         # targets (TILE_N,1) blocks (128-lane pad)
                     + 128 * 4)            # (TILE_N,1) f32 accumulator column
    tile_n = min(plan["working_budget"] // per_row_bytes,
                 plan["logits_buf_cap"] // max(c * itemsize, 1))
    if tile_n >= n:
        tile_n = n                         # one block spanning the whole batch dim
    else:
        tile_n = max(align, (tile_n // align) * align)
    tile_n = int(tile_n)

    # ---- grid: (num_parallel cores) x (steps per core) ------------------------
    n_real_tiles = pl.cdiv(n, tile_n)
    n_tiles_total = pl.cdiv(n_real_tiles, num_parallel) * num_parallel
    steps_per_core = n_tiles_total // num_parallel

    # Only the tiny targets array is padded / reshaped; logits stream untouched.
    n_padded = n_tiles_total * tile_n
    targets_i32 = targets.astype(jnp.int32)
    if n_padded > n:
        targets_i32 = jnp.pad(targets_i32, (0, n_padded - n))
    targets_tiled = targets_i32.reshape(n_tiles_total, tile_n, 1)

    last_tile = int(n_real_tiles - 1)

    def logits_index_map(core, step):
        # Clamp to the last valid tile; replayed rows are masked in-kernel.
        return (jnp.minimum(core * steps_per_core + step, last_tile), 0)

    def targets_index_map(core, step):
        return (core * steps_per_core + step, 0, 0)

    kernel = functools.partial(
        _neg_ce_kernel,
        n_total=n, steps_per_core=steps_per_core, inv_n=1.0 / float(n))

    working_bytes = tile_n * per_row_bytes
    vmem_limit = int(min(max(working_bytes + 8 * _MIB, 32 * _MIB),
                         plan["vmem_cap"]))

    partials = pl.pallas_call(
        kernel,
        out_shape=jax.ShapeDtypeStruct((num_parallel, 1, 1), jnp.float32),
        grid=(num_parallel, steps_per_core),
        in_specs=[
            pl.BlockSpec((tile_n, c), logits_index_map),
            pl.BlockSpec((None, tile_n, 1), targets_index_map),
        ],
        out_specs=pl.BlockSpec((1, 1, 1), lambda core, step: (core, 0, 0)),
        scratch_shapes=[pltpu.VMEM((tile_n, 1), jnp.float32)],
        compiler_params=pltpu.CompilerParams(
            dimension_semantics=("parallel", "arbitrary"),
            vmem_limit_bytes=vmem_limit),
        cost_estimate=pl.CostEstimate(
            flops=int(5 * n * c),
            transcendentals=int(n * (c + 1)),
            bytes_accessed=int(n * c * itemsize + n_padded * 4 + num_parallel * 4)),
    )(logits, targets_tiled)

    # Sum the per-core partials (each already negated and divided by global N).
    return jnp.sum(partials[:, 0, 0])


def _reference(logits, targets):
    logp = jax.nn.log_softmax(logits.astype(jnp.float32), axis=-1)
    nll = -jnp.take_along_axis(logp, targets[:, None].astype(jnp.int32), axis=-1)
    return -jnp.mean(nll)


if __name__ == "__main__":
    key = jax.random.PRNGKey(0)
    k1, k2 = jax.random.split(key)
    N, C = 8, 32
    logits = jax.random.normal(k1, (N, C), dtype=jnp.float32)
    targets = jax.random.randint(k2, (N,), 0, C, dtype=jnp.int32)

    out = neg_grad_loss(logits, targets)
    jax.block_until_ready(out)

    ref = _reference(logits, targets)
    assert jnp.allclose(out, ref, atol=1e-5, rtol=1e-5), (out, ref)
    print("KERNEL_OK")
</pallas_src>

<mosaic_0001>
module attributes {stable_mosaic.version = 11 : i64} {
  func.func @_neg_ce_kernel(%arg0: i32, %arg1: i32, %arg2: memref<8x32xf32, #tpu.memory_space<vmem>>, %arg3: memref<1x8x1xi32, #tpu.memory_space<vmem>>, %arg4: memref<1x1x1xf32, #tpu.memory_space<vmem>>, %arg5: memref<8x1xf32, #tpu.memory_space<vmem>>) attributes {dimension_semantics = [#tpu.dimension_semantics<parallel>, #tpu.dimension_semantics<arbitrary>], iteration_bounds = array<i64: 2, 1>, scalar_prefetch = 0 : i64, scratch_operands = 1 : i64, tpu.core_type = #tpu.core_type<tc>, window_params = [{transform_indices = @transform_0, window_bounds = array<i64: 8, 32>}, {transform_indices = @transform_1, window_bounds = array<i64: 1, 8, 1>}, {transform_indices = @transform_2, window_bounds = array<i64: 1, 1, 1>}]} {
    %c0_i32 = arith.constant 0 : i32
    %0 = arith.cmpi eq, %arg1, %c0_i32 : i32
    %1 = arith.extui %0 : i1 to i32
    %c0_i32_0 = arith.constant 0 : i32
    %2 = arith.cmpi ne, %1, %c0_i32_0 : i32
    scf.if %2 {
      %cst_16 = arith.constant 0.000000e+00 : f32
      %39 = vector.broadcast %cst_16 : f32 to vector<8x1xf32>
      %c0_17 = arith.constant 0 : index
      %c0_18 = arith.constant 0 : index
      %40 = vector.load %arg5[%c0_17, %c0_18] : memref<8x1xf32, #tpu.memory_space<vmem>>, vector<8x1xf32>
      tpu.vector_store %arg5[%c0_17, %c0_18], %39 {strides = array<i32>} : memref<8x1xf32, #tpu.memory_space<vmem>>, vector<8x1xf32>,
    } else {
    }
    %c0 = arith.constant 0 : index
    %c0_1 = arith.constant 0 : index
    %3 = vector.load %arg2[%c0, %c0_1] : memref<8x32xf32, #tpu.memory_space<vmem>>, vector<8x32xf32>
    %c0_2 = arith.constant 0 : index
    %c0_3 = arith.constant 0 : index
    %c0_4 = arith.constant 0 : index
    %4 = vector.load %arg3[%c0_2, %c0_3, %c0_4] : memref<1x8x1xi32, #tpu.memory_space<vmem>>, vector<1x8x1xi32>
    %5 = vector.shape_cast %4 : vector<1x8x1xi32> to vector<8x1xi32>
    %cst = arith.constant dense<0xFF800000> : vector<8xf32>
    %6 = vector.multi_reduction <maximumf>, %3, %cst [1] : vector<8x32xf32> to vector<8xf32>
    %7 = vector.shape_cast %6 : vector<8xf32> to vector<8x1xf32>
    %8 = vector.broadcast %7 : vector<8x1xf32> to vector<8x32xf32>
    %9 = arith.subf %3, %8 : vector<8x32xf32>
    %10 = math.exp %9 : vector<8x32xf32>
    %cst_5 = arith.constant dense<0.000000e+00> : vector<8xf32>
    %11 = vector.multi_reduction <add>, %10, %cst_5 [1] : vector<8x32xf32> to vector<8xf32>
    %12 = vector.shape_cast %11 : vector<8xf32> to vector<8x1xf32>
    %13 = tpu.iota {dimensions = array<i32: 1>} : vector<1x32xi32>
    %14 = vector.broadcast %13 : vector<1x32xi32> to vector<8x32xi32>
    %15 = vector.broadcast %5 : vector<8x1xi32> to vector<8x32xi32>
    %16 = arith.cmpi eq, %14, %15 : vector<8x32xi32>
    %cst_6 = arith.constant 0.000000e+00 : f32
    %17 = vector.broadcast %cst_6 : f32 to vector<8x32xf32>
    %18 = arith.select %16, %9, %17 : vector<8x32xi1>, vector<8x32xf32>
    %cst_7 = arith.constant dense<0.000000e+00> : vector<8xf32>
    %19 = vector.multi_reduction <add>, %18, %cst_7 [1] : vector<8x32xf32> to vector<8xf32>
    %20 = vector.shape_cast %19 : vector<8xf32> to vector<8x1xf32>
    %21 = math.log %12 : vector<8x1xf32>
    %22 = arith.subf %21, %20 : vector<8x1xf32>
    %c1_i32 = arith.constant 1 : i32
    %23 = arith.muli %arg0, %c1_i32 : i32
    %24 = arith.addi %23, %arg1 : i32
    %c8_i32 = arith.constant 8 : i32
    %25 = arith.muli %24, %c8_i32 : i32
    %26 = tpu.iota {dimensions = array<i32: 0>} : vector<8x1xi32>
    %27 = vector.broadcast %25 : i32 to vector<8x1xi32>
    %28 = arith.addi %27, %26 : vector<8x1xi32>
    %c0_8 = arith.constant 0 : index
    %c0_9 = arith.constant 0 : index
    %29 = vector.load %arg5[%c0_8, %c0_9] : memref<8x1xf32, #tpu.memory_space<vmem>>, vector<8x1xf32>
    %c8_i32_10 = arith.constant 8 : i32
    %30 = vector.broadcast %c8_i32_10 : i32 to vector<8x1xi32>
    %31 = arith.cmpi slt, %28, %30 : vector<8x1xi32>
    %cst_11 = arith.constant 0.000000e+00 : f32
    %32 = vector.broadcast %cst_11 : f32 to vector<8x1xf32>
    %33 = arith.select %31, %22, %32 : vector<8x1xi1>, vector<8x1xf32>
    %34 = arith.addf %29, %33 : vector<8x1xf32>
    %c0_12 = arith.constant 0 : index
    %c0_13 = arith.constant 0 : index
    %35 = vector.load %arg5[%c0_12, %c0_13] : memref<8x1xf32, #tpu.memory_space<vmem>>, vector<8x1xf32>
    tpu.vector_store %arg5[%c0_12, %c0_13], %34 {strides = array<i32>} : memref<8x1xf32, #tpu.memory_space<vmem>>, vector<8x1xf32>,
    %c0_i32_14 = arith.constant 0 : i32
    %36 = arith.cmpi eq, %arg1, %c0_i32_14 : i32
    %37 = arith.extui %36 : i1 to i32
    %c0_i32_15 = arith.constant 0 : i32
    %38 = arith.cmpi ne, %37, %c0_i32_15 : i32
    scf.if %38 {
      %c0_16 = arith.constant 0 : index
      %c0_17 = arith.constant 0 : index
      %39 = vector.load %arg5[%c0_16, %c0_17] : memref<8x1xf32, #tpu.memory_space<vmem>>, vector<8x1xf32>
      %cst_18 = arith.constant dense<0.000000e+00> : vector<1xf32>
      %40 = vector.multi_reduction <add>, %39, %cst_18 [0] : vector<8x1xf32> to vector<1xf32>
      %41 = vector.shape_cast %40 : vector<1xf32> to vector<1x1xf32>
      %cst_19 = arith.constant 1.250000e-01 : f32
      %42 = vector.broadcast %cst_19 : f32 to vector<1x1xf32>
      %43 = arith.mulf %41, %42 : vector<1x1xf32>
      %cst_20 = arith.constant 0.000000e+00 : f32
      %44 = vector.broadcast %cst_20 : f32 to vector<1x1xf32>
      %45 = arith.subf %44, %43 : vector<1x1xf32>
      %46 = vector.shape_cast %45 : vector<1x1xf32> to vector<1x1x1xf32>
      %c0_21 = arith.constant 0 : index
      %c0_22 = arith.constant 0 : index
      %c0_23 = arith.constant 0 : index
      %47 = vector.load %arg4[%c0_21, %c0_22, %c0_23] : memref<1x1x1xf32, #tpu.memory_space<vmem>>, vector<1x1x1xf32>
      tpu.vector_store %arg4[%c0_21, %c0_22, %c0_23], %46 {strides = array<i32>} : memref<1x1x1xf32, #tpu.memory_space<vmem>>, vector<1x1x1xf32>,
    } else {
    }
    return
  }
  func.func @transform_0(%arg0: i32, %arg1: i32) -> (i32, i32) {
    %c1_i32 = arith.constant 1 : i32
    %0 = arith.muli %arg0, %c1_i32 : i32
    %1 = arith.addi %0, %arg1 : i32
    %c0_i32 = arith.constant 0 : i32
    %2 = arith.minsi %1, %c0_i32 : i32
    %c0_i32_0 = arith.constant 0 : i32
    %c0_i32_1 = arith.constant 0 : i32
    return %2, %c0_i32_0 : i32, i32
  }
  func.func @transform_1(%arg0: i32, %arg1: i32) -> (i32, i32, i32) {
    %c1_i32 = arith.constant 1 : i32
    %0 = arith.muli %arg0, %c1_i32 : i32
    %1 = arith.addi %0, %arg1 : i32
    %c0_i32 = arith.constant 0 : i32
    %c0_i32_0 = arith.constant 0 : i32
    %c0_i32_1 = arith.constant 0 : i32
    return %1, %c0_i32, %c0_i32_0 : i32, i32, i32
  }
  func.func @transform_2(%arg0: i32, %arg1: i32) -> (i32, i32, i32) {
    %c0_i32 = arith.constant 0 : i32
    %c0_i32_0 = arith.constant 0 : i32
    %c0_i32_1 = arith.constant 0 : i32
    return %arg0, %c0_i32, %c0_i32_0 : i32, i32, i32
  }
}

</mosaic_0001>

<llo_original>
// kernel: tpu_custom_call.1
$region0: #{tpu_custom_call.1}
  #allocation0 [shape = 'u32[]', space=smem, size = 0x4, offset = 0x4, fixed_abs, tag = 'smem constant byte address 0x4 - core index']
  #allocation1 [shape = 'u32[72,128]{1,0:T(1,128)}', space=vmem, size = 0x9000, scoped, tag = 'internal scratch']
  #allocation2 [shape = 'f32[8,1]{1,0:T(8,128)}', space=vmem, size = 0x1000, scoped, tag = 'scratch operand']
  %s0 = inlined_call_operand.vmem [shape: f32[8,32], index: 0, kind: input, shape index: {}]
  %s1 = inlined_call_operand.vmem [shape: s32[2,8,1], index: 1, kind: input, shape index: {}]
  %s2 = inlined_call_operand.vmem [shape: f32[2,1,1], index: 2, kind: output, shape index: {}]
  %s3 = sld [smem:[#allocation0]]
  $region49: #{tpu_custom_call.1} parent=0
    _
  %s5 = ssub.s32 1, %s3
  %s6 = scalar_select 0, %s5, %s3
  loop: start=0, step=1, limit=4
  $region2: #{tpu_custom_call.1} parent=0 // loop_pre_header
    _
  $region3: #{tpu_custom_call.1} parent=0 // loop_header
    %s8 = sphi 0, %s12
    %p9 = scmp.ge.s32.totalorder %s8, 4
    %s15 = sphi 0, %s27
    %s16 = sphi 0, %s23
    %s17 = sphi 0, %s15
    %s18 = sphi 0, %s16
    %s19 = sphi 0, %s17
    %s20 = sphi 0, %s18
    %s36 = sphi 0, %s38
    %s39 = sphi 0, %s36
    %s40 = sphi 0, %s39
    %s56 = sphi 0, %s40
    %s64 = sphi 0, %s66
    %s67 = sphi 0, %s64
    %s68 = sphi 0, %s67
    %s84 = sphi 0, %s68
    %s90 = sphi 0, %s92
    %s93 = sphi 0, %s90
    %s94 = sphi 0, %s93
    %s110 = sphi 0, %s94
  $region4: #{tpu_custom_call.1} parent=0 // loop_header_branch
    %11 = sbr.rel (%p9) target = $region8
  $region5: #{tpu_custom_call.1} parent=0 // loop_body
    %s13 = ssub.s32 %s8, 1
    %s14 = ssub.s32 %s8, 2
    %s21 = sadd.s32 1, %s16
    %p22 = scmp.ge.s32.totalorder %s21, 1
    %s23 = scalar_select %p22, 0, %s21
    %s24 = sadd.s32 1, %s15
    %s25 = scalar_select %p22, %s24, %s15
    %p26 = scmp.ge.s32.totalorder %s25, 2
    %s27 = scalar_select %p26, 0, %s25
    %s28 = sadd.s32 %s15, %s16
    %p29 = scmp.lt.s32.totalorder %s28, 0
    %s30 = scalar_select %p29, %s28, 0
    %s31 = sadd.s32 %s27, %s23
    %p32 = scmp.lt.s32.totalorder %s31, 0
    %s33 = scalar_select %p32, %s31, 0
    %s34 = ssub.s32 %s30, %s33
    %p35 = scmp.eq.s32.totalorder %s34, 0
    %s37 = sadd.s32 %s36, 1
    %s38 = scalar_select %p35, %s36, %s37
    %p41 = pneg %p35
    %p42 = scmp.eq.s32.totalorder %s8, 1
    %p43 = por %p41, %p42
    %p44 = scmp.ne.s32.totalorder %s36, %s39
    %p45 = scmp.eq.s32.totalorder %s8, 0
    %p46 = por %p44, %p45
    %p47 = scmp.ne.s32.totalorder %s36, %s39
    %p48 = scmp.eq.s32.totalorder %s13, 1
    %p49 = por %p47, %p48
    %p50 = scmp.ne.s32.totalorder %s39, %s40
    %p51 = scmp.eq.s32.totalorder %s13, 0
    %p52 = por %p50, %p51
    %p53 = scmp.ne.s32.totalorder %s39, %s40
    %p54 = scmp.eq.s32.totalorder %s14, 1
    %p55 = por %p53, %p54
    %p57 = scmp.ne.s32.totalorder %s40, %s56
    %p58 = scmp.eq.s32.totalorder %s14, 0
    %p59 = por %p57, %p58
    %s60 = sadd.s32 %s15, %s16
    %s61 = sadd.s32 %s27, %s23
    %s62 = ssub.s32 %s60, %s61
    %p63 = scmp.eq.s32.totalorder %s62, 0
    %s65 = sadd.s32 %s64, 1
    %s66 = scalar_select %p63, %s64, %s65
    %p69 = pneg %p63
    %p70 = scmp.eq.s32.totalorder %s8, 1
    %p71 = por %p69, %p70
    %p72 = scmp.ne.s32.totalorder %s64, %s67
    %p73 = scmp.eq.s32.totalorder %s8, 0
    %p74 = por %p72, %p73
    %p75 = scmp.ne.s32.totalorder %s64, %s67
    %p76 = scmp.eq.s32.totalorder %s13, 1
    %p77 = por %p75, %p76
    %p78 = scmp.ne.s32.totalorder %s67, %s68
    %p79 = scmp.eq.s32.totalorder %s13, 0
    %p80 = por %p78, %p79
    %p81 = scmp.ne.s32.totalorder %s67, %s68
    %p82 = scmp.eq.s32.totalorder %s14, 1
    %p83 = por %p81, %p82
    %p85 = scmp.ne.s32.totalorder %s68, %s84
    %p86 = scmp.eq.s32.totalorder %s14, 0
    %p87 = por %p85, %p86
    %s88 = ssub.s32 %s15, %s27
    %p89 = scmp.eq.s32.totalorder %s88, 0
    %s91 = sadd.s32 %s90, 1
    %s92 = scalar_select %p89, %s90, %s91
    %p95 = pneg %p89
    %p96 = scmp.eq.s32.totalorder %s8, 1
    %p97 = por %p95, %p96
    %p98 = scmp.ne.s32.totalorder %s90, %s93
    %p99 = scmp.eq.s32.totalorder %s8, 0
    %p100 = por %p98, %p99
    %p101 = scmp.ne.s32.totalorder %s90, %s93
    %p102 = scmp.eq.s32.totalorder %s13, 1
    %p103 = por %p101, %p102
    %p104 = scmp.ne.s32.totalorder %s93, %s94
    %p105 = scmp.eq.s32.totalorder %s13, 0
    %p106 = por %p104, %p105
    %p107 = scmp.ne.s32.totalorder %s93, %s94
    %p108 = scmp.eq.s32.totalorder %s14, 1
    %p109 = por %p107, %p108
    %p111 = scmp.ne.s32.totalorder %s94, %s110
    %p112 = scmp.eq.s32.totalorder %s14, 0
    %p113 = por %p111, %p112
    %p114 = scmp.le.s32.totalorder 1, %s8
    %p115 = scmp.lt.s32.totalorder %s8, 3
    %p116 = pnand %p114, %p115
    %p117 = pneg %p116
    // Predicated region
    $region9: #{tpu_custom_call.1} parent=5 // pred_check
      _
    $region10: #{tpu_custom_call.1} parent=5 // pred_check_branch
      %119 = sbr.rel (%p116) target = $region12
    $region11: #{tpu_custom_call.1} parent=5 // pred_region
      %s120 = ssub.s32 %s8, 1
    $region12: #{tpu_custom_call.1} parent=5 // pred_fallthru
      _
    %p121 = scmp.lt.s32.totalorder %s8, 2
    // Predicated region
    $region13: #{tpu_custom_call.1} parent=5 // pred_check
      %p122 = pneg %p121
    $region14: #{tpu_custom_call.1} parent=5 // pred_check_branch
      %124 = sbr.rel (%p122) target = $region16
    $region15: #{tpu_custom_call.1} parent=5 // pred_region
      // Predicated region
      $region17: #{tpu_custom_call.1} parent=15 // pred_check
        %p125 = pneg %p46
      $region18: #{tpu_custom_call.1} parent=15 // pred_check_branch
        %127 = sbr.rel (%p125) target = $region20
      $region19: #{tpu_custom_call.1} parent=15 // pred_region
        %s128 = sadd.s32 %s15, %s16
        %p129 = scmp.lt.s32.totalorder %s128, 0
        %s130 = scalar_select %p129, %s128, 0
        %p131 = scmp.lt.s32.totalorder %s130, 0
        %s132 = scalar_select %p131, %s130, 0
        %s133 = smul.addr %s132, 8
        %s134 = scalar_lea.vmem %s0, %s133
        %s135 = sadd.s32 %s15, %s16
        %p136 = scmp.lt.s32.totalorder %s135, 0
        %s137 = scalar_select %p136, %s135, 0
      $region20: #{tpu_custom_call.1} parent=15 // pred_fallthru
        _
      // Predicated region
      $region21: #{tpu_custom_call.1} parent=15 // pred_check
        %p138 = pneg %p74
      $region22: #{tpu_custom_call.1} parent=15 // pred_check_branch
        %140 = sbr.rel (%p138) target = $region24
      $region23: #{tpu_custom_call.1} parent=15 // pred_region
        %s141 = sadd.s32 %s15, %s16
        %p142 = scmp.lt.s32.totalorder %s141, 1
        %s143 = scalar_select %p142, %s141, 1
        %s144 = smul.addr %s143, 8
        %s145 = scalar_lea.vmem %s1, %s144
        %s146 = sadd.s32 %s15, %s16
      $region24: #{tpu_custom_call.1} parent=15 // pred_fallthru
        _
    $region16: #{tpu_custom_call.1} parent=5 // pred_fallthru
      _
    %p147 = scmp.le.s32.totalorder 1, %s8
    %p148 = scmp.lt.s32.totalorder %s8, 3
    %p149 = pnand %p147, %p148
    %p150 = pneg %p149
    // Predicated region
    $region25: #{tpu_custom_call.1} parent=5 // pred_check
      _
    $region26: #{tpu_custom_call.1} parent=5 // pred_check_branch
      %152 = sbr.rel (%p149) target = $region28
    $region27: #{tpu_custom_call.1} parent=5 // pred_region
      %s153 = ssub.s32 %s8, 1
      %s154 = sadd.s32 %s17, %s18
      %p155 = scmp.lt.s32.totalorder %s154, 0
      %s156 = scalar_select %p155, %s154, 0
      %p157 = scmp.lt.s32.totalorder %s156, 0
      %s158 = scalar_select %p157, %s156, 0
      %s159 = smul.addr %s158, 8
      %s160 = scalar_lea.vmem %s0, %s159
      %p161 = pneg %p52
      %p162 = pneg %p49
      %s163 = sadd.s32 %s17, %s18
      %p164 = scmp.lt.s32.totalorder %s163, 1
      %s165 = scalar_select %p164, %s163, 1
      %s166 = smul.addr %s165, 8
      %s167 = scalar_lea.vmem %s1, %s166
      %p168 = pneg %p80
      %p169 = pneg %p77
      %p170 = pneg %p106
      %p171 = pneg %p103
      %p172 = scmp.lt.s32.totalorder %s17, 1
      %s173 = scalar_select %p172, %s17, 1
      %s174 = scalar_lea.vmem %s2, %s173
      %s175 = sadd.s32 %s17, %s18
      %p176 = scmp.lt.s32.totalorder %s175, 0
      %s177 = scalar_select %p176, %s175, 0
      %p178 = scmp.lt.s32.totalorder %s177, 0
      %s179 = scalar_select %p178, %s177, 0
      %s180 = smul.addr %s179, 8
      %s181 = scalar_lea.vmem %s0, %s180
      %s182 = sadd.s32 %s17, %s18
      %p183 = scmp.lt.s32.totalorder %s182, 0
      %s184 = scalar_select %p183, %s182, 0
      %s185 = sadd.s32 %s17, %s18
      %p186 = scmp.lt.s32.totalorder %s185, 1
      %s187 = scalar_select %p186, %s185, 1
      %s188 = smul.addr %s187, 8
      %s189 = scalar_lea.vmem %s1, %s188
      %s190 = sadd.s32 %s17, %s18
      %p191 = scmp.lt.s32.totalorder %s17, 1
      %s192 = scalar_select %p191, %s17, 1
      %s193 = scalar_lea.vmem %s2, %s192
      %p194 = scmp.eq.s32.totalorder %s18, 0
      // Predicated region
      $region29: #{tpu_custom_call.1} parent=27 // pred_check
        %p195 = pneg %p194
      $region30: #{tpu_custom_call.1} parent=27 // pred_check_branch
        %197 = sbr.rel (%p195) target = $region32
      $region31: #{tpu_custom_call.1} parent=27 // pred_region
        %vm198 = vcmask 7168
        %199 = vst.msk [vmem:[#allocation2] sm:$0xff] %vm198, 0.0
      $region32: #{tpu_custom_call.1} parent=27 // pred_fallthru
        _
      %v200 = vld [vmem:[%s181] sm:$0xff]
      %v201 = vld [vmem:[%s189] sm:$0xff]
      %vm202 = vcmask 261120
      %v203 = vsel %vm202, %v200, -inf
      %204 = vmax.xlane.f32.xlu0 %v203
      %v205 = vpop.xlane.xlu0 %204
      %v206 = vsub.f32 %v200, %v205
      %v207 = vmul.f32 %v206, 1.442695
      %v208 = vpow.pop %v207
      %v209 = vsel %vm202, %v208, 0.0
      %210 = vadd.xlane.f32.xlu0 %v209
      %v211 = vpop.xlane.xlu0 %210
      %v212 = vlaneseq
      %v213 = vand.u32 %v212, 127
      %214 = vset.pattern.permute.xlu0 0
      %215 = vperm.xlu0 %214, %v201
      %v216 = vpop.permute.xlu0 %215
      %vm217 = vcmp.eq.s32.totalorder %v213, %v216
      %v218 = vsel %vm217, %v206, 0.0
      %v219 = vsel %vm202, %v218, 0.0
      %220 = vadd.xlane.f32.xlu0 %v219
      %v221 = vpop.xlane.xlu0 %220
      %v222 = vlog2.pop %v211
      %v223 = vmul.f32 %v222, 0.6931472
      %v224 = vsub.f32 %v223, %v221
      %s225 = sadd.s32 %s17, %s18
      %s226 = smul.u32 %s225, 8
      %v227 = vlaneseq
      %v228 = vshrl.u32 %v227, 7
      %v229 = vstv %s226
      %v230 = vadd.s32 %v229, %v228
      %v231 = vld [vmem:[#allocation2] sm:$0xff]
      %vm232 = vcmp.lt.s32.totalorder %v230, 8
      %v233 = vsel %vm232, %v224, 0.0
      %v234 = vadd.f32 %v231, %v233
      %vm235 = vcmask 7168
      %236 = vst.msk [vmem:[#allocation2] sm:$0xff] %vm235, %v234
      // Predicated region
      $region33: #{tpu_custom_call.1} parent=27 // pred_check
        %p237 = pneg %p194
      $region34: #{tpu_custom_call.1} parent=27 // pred_check_branch
        %239 = sbr.rel (%p237) target = $region36
      $region35: #{tpu_custom_call.1} parent=27 // pred_region
        %v240 = vld [vmem:[#allocation2] sm:$0xff]
        %v241 = vsel %vm235, %v240, 0.0
        %v242 = vrot.slane %v241, 4
        %v243 = vadd.f32 %v241, %v242
        %v244 = vrot.slane %v243, 2
        %v245 = vadd.f32 %v243, %v244
        %v246 = vrot.slane %v245, 1
        %v247 = vadd.f32 %v245, %v246
        %v248 = vmul.f32 %v247, 0.125
        %v249 = vsub.f32 0.0, %v248
        %vm250 = vcmask 0
        %251 = vst.msk [vmem:[%s193] sm:$0x1] %vm250, %v249
      $region36: #{tpu_custom_call.1} parent=27 // pred_fallthru
        _
      %p252 = scmp.lt.s32.totalorder %s17, 1
      %s253 = scalar_select %p252, %s17, 1
      %s254 = scalar_lea.vmem %s2, %s253
      // Predicated region
      $region37: #{tpu_custom_call.1} parent=27 // pred_check
        %p255 = pneg %p103
      $region38: #{tpu_custom_call.1} parent=27 // pred_check_branch
        %257 = sbr.rel (%p255) target = $region40
      $region39: #{tpu_custom_call.1} parent=27 // pred_region
        _
      $region40: #{tpu_custom_call.1} parent=27 // pred_fallthru
        _
    $region28: #{tpu_custom_call.1} parent=5 // pred_fallthru
      _
    %p258 = scmp.le.s32.totalorder 2, %s8
    // Predicated region
    $region41: #{tpu_custom_call.1} parent=5 // pred_check
      %p259 = pneg %p258
    $region42: #{tpu_custom_call.1} parent=5 // pred_check_branch
      %261 = sbr.rel (%p259) target = $region44
    $region43: #{tpu_custom_call.1} parent=5 // pred_region
      %s262 = ssub.s32 %s8, 2
      // Predicated region
      $region45: #{tpu_custom_call.1} parent=43 // pred_check
        %p263 = pneg %p109
      $region46: #{tpu_custom_call.1} parent=43 // pred_check_branch
        %265 = sbr.rel (%p263) target = $region48
      $region47: #{tpu_custom_call.1} parent=43 // pred_region
        %p266 = scmp.lt.s32.totalorder %s19, 1
        %s267 = scalar_select %p266, %s19, 1
        %s268 = scalar_lea.vmem %s2, %s267
      $region48: #{tpu_custom_call.1} parent=43 // pred_fallthru
        _
    $region44: #{tpu_custom_call.1} parent=5 // pred_fallthru
      _
  $region6: #{tpu_custom_call.1} parent=0 // loop_footer
    %s12 = sadd.s32 1, %s8
  $region7: #{tpu_custom_call.1} parent=0 // loop_footer_branch
    %7 = sbr.rel target = $region3
  $region8: #{tpu_custom_call.1} parent=0 // loop_exit
    _

</llo_original>
